<compile_context>
chip_gen: v7x
topology: tpu7x:2x2x1
jax: 0.10.0
libtpu: 0.0.40
codegen_flags: <defaults>
</compile_context>

<pallas_src>
import jax
import jax.numpy as jnp
from jax.experimental import pallas as pl
from jax.experimental.pallas import tpu as pltpu


def _round_up(n, m):
    return ((n + m - 1) // m) * m


def lola_kernel(xt_ref, m_ref):
    x = xt_ref[...]                                # (4, TILE): rows E, px, py, pz
    e, px, py, pz = x[0:1, :], x[1:2, :], x[2:3, :], x[3:4, :]
    m2 = e * e - px * px - py * py - pz * pz       # (1, TILE)  -- VPU only
    m_ref[...] = jnp.sqrt(m2).astype(m_ref.dtype)  # EUP sqrt; m2<0 -> NaN (torch match)


def lola(x, in_dim, *, tile_m=128 * 1024):
    """Pallas implementation of LoLa.forward.  x: (B, in_dim, 4) -> (B, in_dim)."""
    # goodinput(): 3-D with trailing dims (inDim, 4)
    assert x.ndim == 3 and x.shape[1:] == (in_dim, 4), "bad input shape"
    B = x.shape[0]
    M = B * in_dim

    # Component-major, lane-dense layout: (4, M_pad), zero-padded tail.
    xt = jnp.transpose(x.reshape(M, 4))            # (4, M)   layout plumbing only
    tile = min(tile_m, _round_up(M, 128))          # lane tile, multiple of 128
    M_pad = _round_up(M, tile)
    if M_pad != M:
        xt = jnp.pad(xt, ((0, 0), (0, M_pad - M)))

    grid = (M_pad // tile,)
    out = pl.pallas_call(
        lola_kernel,
        out_shape=jax.ShapeDtypeStruct((1, M_pad), x.dtype),
        grid=grid,
        in_specs=[pl.BlockSpec((4, tile), lambda i: (0, i))],
        out_specs=pl.BlockSpec((1, tile), lambda i: (0, i)),
        compiler_params=pltpu.CompilerParams(
            dimension_semantics=("parallel",)),
        cost_estimate=pl.CostEstimate(
            flops=7 * M_pad,
            transcendentals=M_pad,
            bytes_accessed=(4 * M_pad + M_pad) * x.dtype.itemsize),
    )(xt)

    return out[0, :M].reshape(B, in_dim)


if __name__ == "__main__":
    in_dim = 6     # module docstring: input (N, 6, 4) -> output (N, 6)
    batch = 8

    key = jax.random.PRNGKey(0)
    k1, k2 = jax.random.split(key)
    # Build physically valid 4-vectors (E^2 >= |p|^2) so masses are finite.
    p = jax.random.normal(k1, (batch, in_dim, 3), dtype=jnp.float32)
    m_true = jax.random.uniform(k2, (batch, in_dim), dtype=jnp.float32) + 0.5
    e = jnp.sqrt(jnp.sum(p * p, axis=-1) + m_true * m_true)
    x = jnp.concatenate([e[..., None], p], axis=-1)       # (B, 6, 4)

    out = jax.block_until_ready(lola(x, in_dim))

    # Pure-JAX reference == torch.einsum('bni,ij,bnj->bn', x, diag(1,-1,-1,-1), x) then sqrt
    ref = jnp.sqrt(x[..., 0] ** 2 - x[..., 1] ** 2 - x[..., 2] ** 2 - x[..., 3] ** 2)
    assert out.shape == (batch, in_dim)
    assert out.dtype == x.dtype
    assert jnp.allclose(out, ref, atol=1e-5, rtol=1e-5)
    print("KERNEL_OK")
</pallas_src>

<mosaic_0001>
module attributes {stable_mosaic.version = 11 : i64} {
  func.func @lola_kernel(%arg0: i32, %arg1: memref<4x128xf32, #tpu.memory_space<vmem>>, %arg2: memref<1x128xf32, #tpu.memory_space<vmem>>) attributes {dimension_semantics = [#tpu.dimension_semantics<parallel>], iteration_bounds = array<i64: 1>, scalar_prefetch = 0 : i64, scratch_operands = 0 : i64, tpu.core_type = #tpu.core_type<tc>, window_params = [{transform_indices = @transform_0, window_bounds = array<i64: 4, 128>}, {transform_indices = @transform_1, window_bounds = array<i64: 1, 128>}]} {
    %c0 = arith.constant 0 : index
    %c0_0 = arith.constant 0 : index
    %0 = vector.load %arg1[%c0, %c0_0] : memref<4x128xf32, #tpu.memory_space<vmem>>, vector<4x128xf32>
    %1 = vector.extract_strided_slice %0 {offsets = [0, 0], sizes = [1, 128], strides = [1, 1]} : vector<4x128xf32> to vector<1x128xf32>
    %2 = vector.extract_strided_slice %0 {offsets = [1, 0], sizes = [1, 128], strides = [1, 1]} : vector<4x128xf32> to vector<1x128xf32>
    %3 = vector.extract_strided_slice %0 {offsets = [2, 0], sizes = [1, 128], strides = [1, 1]} : vector<4x128xf32> to vector<1x128xf32>
    %4 = vector.extract_strided_slice %0 {offsets = [3, 0], sizes = [1, 128], strides = [1, 1]} : vector<4x128xf32> to vector<1x128xf32>
    %5 = arith.mulf %1, %1 : vector<1x128xf32>
    %6 = arith.mulf %2, %2 : vector<1x128xf32>
    %7 = arith.subf %5, %6 : vector<1x128xf32>
    %8 = arith.mulf %3, %3 : vector<1x128xf32>
    %9 = arith.subf %7, %8 : vector<1x128xf32>
    %10 = arith.mulf %4, %4 : vector<1x128xf32>
    %11 = arith.subf %9, %10 : vector<1x128xf32>
    %12 = math.sqrt %11 : vector<1x128xf32>
    %c0_1 = arith.constant 0 : index
    %c0_2 = arith.constant 0 : index
    %13 = vector.load %arg2[%c0_1, %c0_2] : memref<1x128xf32, #tpu.memory_space<vmem>>, vector<1x128xf32>
    tpu.vector_store %arg2[%c0_1, %c0_2], %12 {strides = array<i32>} : memref<1x128xf32, #tpu.memory_space<vmem>>, vector<1x128xf32>,
    return
  }
  func.func @transform_0(%arg0: i32) -> (i32, i32) {
    %c0_i32 = arith.constant 0 : i32
    %c0_i32_0 = arith.constant 0 : i32
    return %c0_i32, %arg0 : i32, i32
  }
  func.func @transform_1(%arg0: i32) -> (i32, i32) {
    %c0_i32 = arith.constant 0 : i32
    %c0_i32_0 = arith.constant 0 : i32
    return %c0_i32, %arg0 : i32, i32
  }
}

</mosaic_0001>

<llo_original>
// kernel: tpu_custom_call.1
$region0: #{tpu_custom_call.1}
  #allocation0 [shape = 'u32[]', space=smem, size = 0x4, offset = 0x4, fixed_abs, tag = 'smem constant byte address 0x4 - core index']
  #allocation1 [shape = 'u32[144,128]{1,0:T(1,128)}', space=vmem, size = 0x12000, scoped, tag = 'internal scratch']
  %s0 = inlined_call_operand.hbm [shape: f32[4,128], index: 0, kind: input, shape index: {}]
  %s1 = inlined_call_operand.hbm [shape: f32[1,128], index: 1, kind: output, shape index: {}]
  %s2 = sld [smem:[#allocation0]]
  $region18: #{tpu_custom_call.1} parent=0
    _
  %s4 = ssub.s32 1, %s2
  %s5 = scalar_select 0, %s4, %s2
  $region1: #{tpu_custom_call.1} parent=0
    #allocation2 [shape = 'u8[2048]{0}', space=vmem, size = 0x800, scoped, tag = 'input window, operand 0, single buffered']
    #allocation3 [shape = 's32[1]{0}', space=sflag, size = 0x4, scoped, tag = 'scoped memory for tpu_custom_call.1']
    #allocation4 [shape = 's32[1]{0}', space=sflag, size = 0x4, scoped, tag = 'scoped memory for tpu_custom_call.1']
    #allocation5 [shape = 'u8[512]{0}', space=vmem, size = 0x400, scoped, tag = 'output window, operand 0, single buffered']
    %6 = vsyncpa [#allocation3], 0
    %7 = vsyncpa [#allocation4], 0
    // Predicated region
    $region2: #{tpu_custom_call.1} parent=1 // pred_check
      _
    $region3: #{tpu_custom_call.1} parent=1 // pred_check_branch
      %9 = sbr.rel (0) target = $region5
    $region4: #{tpu_custom_call.1} parent=1 // pred_region
      %s11 = ssub.s32 64, 64
      %12 = vsyncadd [#allocation3], %s11
      %s14 = sshll.u32 [#allocation2], 4
      %s15 = int_to_ptr.vmem [resolvable:$true] %s14
      %17 = dma.hbm_to_vmem [thread:$0]  %s0, 64, %s15, [#allocation3]
    $region5: #{tpu_custom_call.1} parent=1 // pred_fallthru
      _
    // Predicated region
    $region6: #{tpu_custom_call.1} parent=1 // pred_check
      _
    $region7: #{tpu_custom_call.1} parent=1 // pred_check_branch
      %19 = sbr.rel (0) target = $region9
    $region8: #{tpu_custom_call.1} parent=1 // pred_region
      %20 = dma.done [#allocation3], 64
    $region9: #{tpu_custom_call.1} parent=1 // pred_fallthru
      _
    %v21 = vld [vmem:[#allocation2] sm:$0xf]
    %v22 = vmul.f32 %v21, %v21
    %v24 = vrot.slane %v22, 1
    %v26 = vsub.f32 %v22, %v24
    %v27 = vrot.slane %v22, 2
    %v29 = vsub.f32 %v26, %v27
    %v30 = vrot.slane %v22, 3
    %v32 = vsub.f32 %v29, %v30
    %v33 = vrsqrt.pop %v32
    %v34 = vmul.f32 %v32, %v33
    %vm35 = vcmp.eq.f32.partialorder %v32, inf
    %v36 = vsel %vm35, %v32, %v34
    %vm37 = vcmp.eq.f32.partialorder %v32, 0.0
    %v38 = vand.u32 %v32, 2147483648
    %v39 = vsel %vm37, %v38, %v36
    %40 = vst [vmem:[#allocation5] sm:$0x1] %v39
    // Predicated region
    $region10: #{tpu_custom_call.1} parent=1 // pred_check
      _
    $region11: #{tpu_custom_call.1} parent=1 // pred_check_branch
      %42 = sbr.rel (0) target = $region13
    $region12: #{tpu_custom_call.1} parent=1 // pred_region
      %s44 = ssub.s32 16, 16
      %45 = vsyncadd [#allocation4], %s44
      %s47 = sshll.u32 [#allocation5], 4
      %s48 = int_to_ptr.vmem [resolvable:$true] %s47
      %50 = dma.vmem_to_hbm [thread:$0]  %s48, 16, %s1, [#allocation4]
    $region13: #{tpu_custom_call.1} parent=1 // pred_fallthru
      _
    // Predicated region
    $region14: #{tpu_custom_call.1} parent=1 // pred_check
      _
    $region15: #{tpu_custom_call.1} parent=1 // pred_check_branch
      %52 = sbr.rel (0) target = $region17
    $region16: #{tpu_custom_call.1} parent=1 // pred_region
      %53 = dma.done [#allocation4], 16
    $region17: #{tpu_custom_call.1} parent=1 // pred_fallthru
      _
    %54 = vsyncpa [#allocation3], 1
    %55 = vsyncpa [#allocation4], 1

</llo_original>
